<compile_context>
chip_gen: v5e
topology: v5e:2x2
jax: 0.10.0
libtpu: 0.0.40
codegen_flags: <defaults>
</compile_context>

<pallas_src>
import jax
import jax.numpy as jnp
from jax.experimental import pallas as pl
from jax.experimental.pallas import tpu as pltpu

SMOOTH = 1e-6
# log((1 - 1e-6) / 1e-6): clamping the logit to [-L, L] is identical to
# clamping sigmoid(logit) to [1e-6, 1 - 1e-6].
_LOGIT_CLAMP = 13.815510557964274

_COLS = 512        # lane-dense width (multiple of 128)
_MAX_BLK_ROWS = 256  # 256 x 512 f32 = 512 KiB per buffer per array


def _bce_kernel(out_ref, tgt_ref, loss_ref):
    x = out_ref[...].astype(jnp.float32)
    t = tgt_ref[...].astype(jnp.float32)
    xc = jnp.clip(x, -_LOGIT_CLAMP, _LOGIT_CLAMP)
    # softplus(xc) - t * xc  ==  -t*log(p) - (1-t)*log(1-p)
    # with p = clip(sigmoid(x), SMOOTH, 1 - SMOOTH).
    sp = jnp.maximum(xc, 0.0) + jnp.log1p(jnp.exp(-jnp.abs(xc)))
    loss_ref[...] = (sp - t * xc).astype(loss_ref.dtype)


def bce_loss(output, target):
    """Pallas equivalent of BCELoss.forward: per-element loss, same shape as input."""
    assert output.shape == target.shape
    orig_shape = output.shape

    total = 1
    for d in orig_shape:
        total *= d

    # Lane-dense 2D slab: (rows, 512). Pad rows so blocks tile evenly.
    rows = -(-total // _COLS)
    if rows <= _MAX_BLK_ROWS:
        blk_r = max(8, -(-rows // 8) * 8)      # one block, sublane-aligned
    else:
        blk_r = _MAX_BLK_ROWS
    rows_padded = -(-rows // blk_r) * blk_r
    padded_total = rows_padded * _COLS
    pad = padded_total - total

    out_flat = output.reshape(-1)
    tgt_flat = target.reshape(-1)
    if pad:
        out_flat = jnp.pad(out_flat, (0, pad))
        tgt_flat = jnp.pad(tgt_flat, (0, pad))
    out2d = out_flat.reshape(rows_padded, _COLS)
    tgt2d = tgt_flat.reshape(rows_padded, _COLS)

    grid = (rows_padded // blk_r,)

    loss2d = pl.pallas_call(
        _bce_kernel,
        out_shape=jax.ShapeDtypeStruct((rows_padded, _COLS), jnp.float32),
        grid=grid,
        in_specs=[
            pl.BlockSpec((blk_r, _COLS), lambda i: (i, 0)),
            pl.BlockSpec((blk_r, _COLS), lambda i: (i, 0)),
        ],
        out_specs=pl.BlockSpec((blk_r, _COLS), lambda i: (i, 0)),
        compiler_params=pltpu.CompilerParams(
            dimension_semantics=("parallel",),
            vmem_limit_bytes=64 << 20,
        ),
    )(out2d, tgt2d)

    loss_flat = loss2d.reshape(-1)
    if pad:
        loss_flat = loss_flat[:total]
    return loss_flat.reshape(orig_shape)


if __name__ == "__main__":
    key = jax.random.PRNGKey(0)
    k1, k2 = jax.random.split(key)
    # Small NCHW shapes consistent with a segmentation-style loss input.
    x_shape = (2, 4, 16, 16)
    logits = jax.random.normal(k1, x_shape, dtype=jnp.float32)
    # Binary target in {0, 1}
    target = (jax.random.uniform(k2, x_shape) > 0.5).astype(jnp.float32)

    loss = bce_loss(logits, target)
    jax.block_until_ready(loss)

    # Reference in plain JAX (mirrors the PyTorch forward exactly).
    prob = jax.nn.sigmoid(logits)
    prob = jnp.clip(prob, SMOOTH, 1.0 - SMOOTH)
    ref = -target * jnp.log(prob) - (1.0 - target) * jnp.log(1.0 - prob)
    assert loss.shape == x_shape
    assert jnp.allclose(loss, ref, atol=1e-5, rtol=1e-5)

    print("KERNEL_OK")
</pallas_src>

<mosaic_0001>
module attributes {stable_mosaic.version = 11 : i64} {
  func.func @_bce_kernel(%arg0: i32, %arg1: memref<8x512xf32, #tpu.memory_space<vmem>>, %arg2: memref<8x512xf32, #tpu.memory_space<vmem>>, %arg3: memref<8x512xf32, #tpu.memory_space<vmem>>) attributes {dimension_semantics = [#tpu.dimension_semantics<parallel>], iteration_bounds = array<i64: 1>, scalar_prefetch = 0 : i64, scratch_operands = 0 : i64, tpu.core_type = #tpu.core_type<tc>, window_params = [{transform_indices = @transform_0, window_bounds = array<i64: 8, 512>}, {transform_indices = @transform_1, window_bounds = array<i64: 8, 512>}, {transform_indices = @transform_2, window_bounds = array<i64: 8, 512>}]} {
    %c0 = arith.constant 0 : index
    %c0_0 = arith.constant 0 : index
    %0 = vector.load %arg1[%c0, %c0_0] : memref<8x512xf32, #tpu.memory_space<vmem>>, vector<8x512xf32>
    %c0_1 = arith.constant 0 : index
    %c0_2 = arith.constant 0 : index
    %1 = vector.load %arg2[%c0_1, %c0_2] : memref<8x512xf32, #tpu.memory_space<vmem>>, vector<8x512xf32>
    %cst = arith.constant -13.8155107 : f32
    %cst_3 = arith.constant 13.8155107 : f32
    %2 = vector.broadcast %cst : f32 to vector<8x512xf32>
    %3 = arith.maximumf %2, %0 : vector<8x512xf32>
    %4 = vector.broadcast %cst_3 : f32 to vector<8x512xf32>
    %5 = arith.minimumf %4, %3 : vector<8x512xf32>
    %cst_4 = arith.constant 0.000000e+00 : f32
    %6 = vector.broadcast %cst_4 : f32 to vector<8x512xf32>
    %7 = arith.maximumf %5, %6 : vector<8x512xf32>
    %8 = math.absf %5 : vector<8x512xf32>
    %cst_5 = arith.constant 0.000000e+00 : f32
    %9 = vector.broadcast %cst_5 : f32 to vector<8x512xf32>
    %10 = arith.subf %9, %8 : vector<8x512xf32>
    %11 = math.exp %10 : vector<8x512xf32>
    %12 = math.log1p %11 : vector<8x512xf32>
    %13 = arith.addf %7, %12 : vector<8x512xf32>
    %14 = arith.mulf %1, %5 : vector<8x512xf32>
    %15 = arith.subf %13, %14 : vector<8x512xf32>
    %c0_6 = arith.constant 0 : index
    %c0_7 = arith.constant 0 : index
    %16 = vector.load %arg3[%c0_6, %c0_7] : memref<8x512xf32, #tpu.memory_space<vmem>>, vector<8x512xf32>
    tpu.vector_store %arg3[%c0_6, %c0_7], %15 {strides = array<i32>} : memref<8x512xf32, #tpu.memory_space<vmem>>, vector<8x512xf32>,
    return
  }
  func.func @transform_0(%arg0: i32) -> (i32, i32) {
    %c0_i32 = arith.constant 0 : i32
    %c0_i32_0 = arith.constant 0 : i32
    return %arg0, %c0_i32 : i32, i32
  }
  func.func @transform_1(%arg0: i32) -> (i32, i32) {
    %c0_i32 = arith.constant 0 : i32
    %c0_i32_0 = arith.constant 0 : i32
    return %arg0, %c0_i32 : i32, i32
  }
  func.func @transform_2(%arg0: i32) -> (i32, i32) {
    %c0_i32 = arith.constant 0 : i32
    %c0_i32_0 = arith.constant 0 : i32
    return %arg0, %c0_i32 : i32, i32
  }
}

</mosaic_0001>

<llo_original>
// kernel: tpu_custom_call.1
$region0: #{tpu_custom_call.1}
  #allocation0 [shape = 'u32[]', space=smem, size = 0x4, offset = 0x4, fixed_abs, tag = 'smem constant byte address 0x4 - core index']
  #allocation1 [shape = 'u32[72,128]{1,0:T(1,128)}', space=vmem, size = 0x9000, scoped, tag = 'internal scratch']
  %s0 = inlined_call_operand.hbm [shape: f32[8,512], index: 0, kind: input, shape index: {}]
  %s1 = inlined_call_operand.hbm [shape: f32[8,512], index: 1, kind: input, shape index: {}]
  %s2 = inlined_call_operand.hbm [shape: f32[8,512], index: 2, kind: output, shape index: {}]
  %s3 = sld [smem:[#allocation0]]
  $region26: #{tpu_custom_call.1} parent=0
    _
  %s5 = ssub.s32 1, %s3
  %s6 = scalar_select 0, %s5, %s3
  $region1: #{tpu_custom_call.1} parent=0
    #allocation2 [shape = 'u8[16384]{0}', space=vmem, size = 0x4000, scoped, tag = 'input window, operand 0, single buffered']
    #allocation3 [shape = 's32[1]{0}', space=sflag, size = 0x4, scoped, tag = 'scoped memory for tpu_custom_call.1']
    #allocation4 [shape = 's32[1]{0}', space=sflag, size = 0x4, scoped, tag = 'scoped memory for tpu_custom_call.1']
    #allocation5 [shape = 'u8[16384]{0}', space=vmem, size = 0x4000, scoped, tag = 'input window, operand 1, single buffered']
    #allocation6 [shape = 's32[1]{0}', space=sflag, size = 0x4, scoped, tag = 'scoped memory for tpu_custom_call.1']
    #allocation7 [shape = 'u8[16384]{0}', space=vmem, size = 0x4000, scoped, tag = 'output window, operand 0, single buffered']
    %7 = vsyncpa [#allocation3], 0
    %8 = vsyncpa [#allocation6], 0
    %9 = vsyncpa [#allocation4], 0
    // Predicated region
    $region2: #{tpu_custom_call.1} parent=1 // pred_check
      _
    $region3: #{tpu_custom_call.1} parent=1 // pred_check_branch
      %11 = sbr.rel (0) target = $region5
    $region4: #{tpu_custom_call.1} parent=1 // pred_region
      %13 = vsyncadd [#allocation3], 0
      %s15 = sshll.u32 %s0, 4
      %s16 = int_to_ptr.hbm [resolvable:$true] %s15
      %s17 = sshll.u32 [#allocation2], 4
      %s18 = int_to_ptr.vmem [resolvable:$true] %s17
      %20 = dma.hbm_to_vmem [thread:$0]  %s16, 512, %s18, [#allocation3]
    $region5: #{tpu_custom_call.1} parent=1 // pred_fallthru
      _
    // Predicated region
    $region6: #{tpu_custom_call.1} parent=1 // pred_check
      _
    $region7: #{tpu_custom_call.1} parent=1 // pred_check_branch
      %22 = sbr.rel (0) target = $region9
    $region8: #{tpu_custom_call.1} parent=1 // pred_region
      %24 = vsyncadd [#allocation6], 0
      %s26 = sshll.u32 %s1, 4
      %s27 = int_to_ptr.hbm [resolvable:$true] %s26
      %s28 = sshll.u32 [#allocation5], 4
      %s29 = int_to_ptr.vmem [resolvable:$true] %s28
      %31 = dma.hbm_to_vmem [thread:$0]  %s27, 512, %s29, [#allocation6]
    $region9: #{tpu_custom_call.1} parent=1 // pred_fallthru
      _
    // Predicated region
    $region10: #{tpu_custom_call.1} parent=1 // pred_check
      _
    $region11: #{tpu_custom_call.1} parent=1 // pred_check_branch
      %33 = sbr.rel (0) target = $region13
    $region12: #{tpu_custom_call.1} parent=1 // pred_region
      %35 = dma.done [#allocation3], 512
    $region13: #{tpu_custom_call.1} parent=1 // pred_fallthru
      _
    // Predicated region
    $region14: #{tpu_custom_call.1} parent=1 // pred_check
      _
    $region15: #{tpu_custom_call.1} parent=1 // pred_check_branch
      %37 = sbr.rel (0) target = $region17
    $region16: #{tpu_custom_call.1} parent=1 // pred_region
      %39 = dma.done [#allocation6], 512
    $region17: #{tpu_custom_call.1} parent=1 // pred_fallthru
      _
    %v40 = vld [vmem:[#allocation2] sm:$0xff]
    %v41 = vld [vmem:[#allocation2 + $0x8] sm:$0xff]
    %v42 = vld [vmem:[#allocation2 + $0x10] sm:$0xff]
    %v43 = vld [vmem:[#allocation2 + $0x18] sm:$0xff]
    %v44 = vld [vmem:[#allocation5] sm:$0xff]
    %v45 = vld [vmem:[#allocation5 + $0x8] sm:$0xff]
    %v46 = vld [vmem:[#allocation5 + $0x10] sm:$0xff]
    %v47 = vld [vmem:[#allocation5 + $0x18] sm:$0xff]
    %v48 = vmax.f32 %v40, -13.815511
    %v49 = vmax.f32 %v41, -13.815511
    %v50 = vmax.f32 %v42, -13.815511
    %v51 = vmax.f32 %v43, -13.815511
    %v52 = vmin.f32 %v48, 13.815511
    %v53 = vmin.f32 %v49, 13.815511
    %v54 = vmin.f32 %v50, 13.815511
    %v55 = vmin.f32 %v51, 13.815511
    %v56 = vmax.f32 %v52, 0.0
    %v57 = vmax.f32 %v53, 0.0
    %v58 = vmax.f32 %v54, 0.0
    %v59 = vmax.f32 %v55, 0.0
    %v60 = vand.u32 2147483647, %v52
    %v61 = vand.u32 2147483647, %v53
    %v62 = vand.u32 2147483647, %v54
    %v63 = vand.u32 2147483647, %v55
    %v64 = vsub.f32 0.0, %v60
    %v65 = vsub.f32 0.0, %v61
    %v66 = vsub.f32 0.0, %v62
    %v67 = vsub.f32 0.0, %v63
    %v68 = vmul.f32 %v64, 1.442695
    %v69 = vpow.pop %v68
    %v70 = vmul.f32 %v65, 1.442695
    %v71 = vpow.pop %v70
    %v72 = vmul.f32 %v66, 1.442695
    %v73 = vpow.pop %v72
    %v74 = vmul.f32 %v67, 1.442695
    %v75 = vpow.pop %v74
    %v76 = vadd.f32 %v69, 1.0
    %v77 = vlog2.pop %v76
    %v78 = vmul.f32 %v77, 0.6931472
    %v79 = vmul.f32 -0.5, %v69
    %v80 = vadd.f32 %v79, 1.0
    %v81 = vmul.f32 %v80, %v69
    %v82 = vand.u32 2147483647, %v69
    %vm83 = vcmp.lt.f32.partialorder %v82, 0.0004427343
    %v84 = vsel %vm83, %v81, %v78
    %v85 = vadd.f32 %v71, 1.0
    %v86 = vlog2.pop %v85
    %v87 = vmul.f32 %v86, 0.6931472
    %v88 = vmul.f32 -0.5, %v71
    %v89 = vadd.f32 %v88, 1.0
    %v90 = vmul.f32 %v89, %v71
    %v91 = vand.u32 2147483647, %v71
    %vm92 = vcmp.lt.f32.partialorder %v91, 0.0004427343
    %v93 = vsel %vm92, %v90, %v87
    %v94 = vadd.f32 %v73, 1.0
    %v95 = vlog2.pop %v94
    %v96 = vmul.f32 %v95, 0.6931472
    %v97 = vmul.f32 -0.5, %v73
    %v98 = vadd.f32 %v97, 1.0
    %v99 = vmul.f32 %v98, %v73
    %v100 = vand.u32 2147483647, %v73
    %vm101 = vcmp.lt.f32.partialorder %v100, 0.0004427343
    %v102 = vsel %vm101, %v99, %v96
    %v103 = vadd.f32 %v75, 1.0
    %v104 = vlog2.pop %v103
    %v105 = vmul.f32 %v104, 0.6931472
    %v106 = vmul.f32 -0.5, %v75
    %v107 = vadd.f32 %v106, 1.0
    %v108 = vmul.f32 %v107, %v75
    %v109 = vand.u32 2147483647, %v75
    %vm110 = vcmp.lt.f32.partialorder %v109, 0.0004427343
    %v111 = vsel %vm110, %v108, %v105
    %v112 = vadd.f32 %v56, %v84
    %v113 = vadd.f32 %v57, %v93
    %v114 = vadd.f32 %v58, %v102
    %v115 = vadd.f32 %v59, %v111
    %v116 = vmul.f32 %v44, %v52
    %v117 = vmul.f32 %v45, %v53
    %v118 = vmul.f32 %v46, %v54
    %v119 = vmul.f32 %v47, %v55
    %v120 = vsub.f32 %v112, %v116
    %v121 = vsub.f32 %v113, %v117
    %v122 = vsub.f32 %v114, %v118
    %v123 = vsub.f32 %v115, %v119
    %124 = vst [vmem:[#allocation7] sm:$0xff] %v120
    %125 = vst [vmem:[#allocation7 + $0x8] sm:$0xff] %v121
    %126 = vst [vmem:[#allocation7 + $0x10] sm:$0xff] %v122
    %127 = vst [vmem:[#allocation7 + $0x18] sm:$0xff] %v123
    // Predicated region
    $region18: #{tpu_custom_call.1} parent=1 // pred_check
      _
    $region19: #{tpu_custom_call.1} parent=1 // pred_check_branch
      %129 = sbr.rel (0) target = $region21
    $region20: #{tpu_custom_call.1} parent=1 // pred_region
      %131 = vsyncadd [#allocation4], 0
      %s133 = sshll.u32 [#allocation7], 4
      %s134 = int_to_ptr.vmem [resolvable:$true] %s133
      %s135 = sshll.u32 %s2, 4
      %s136 = int_to_ptr.hbm [resolvable:$true] %s135
      %138 = dma.vmem_to_hbm [thread:$0]  %s134, 512, %s136, [#allocation4]
    $region21: #{tpu_custom_call.1} parent=1 // pred_fallthru
      _
    // Predicated region
    $region22: #{tpu_custom_call.1} parent=1 // pred_check
      _
    $region23: #{tpu_custom_call.1} parent=1 // pred_check_branch
      %140 = sbr.rel (0) target = $region25
    $region24: #{tpu_custom_call.1} parent=1 // pred_region
      %142 = dma.done [#allocation4], 512
    $region25: #{tpu_custom_call.1} parent=1 // pred_fallthru
      _
    %143 = vsyncpa [#allocation3], 1
    %144 = vsyncpa [#allocation6], 1
    %145 = vsyncpa [#allocation4], 1

</llo_original>
